<compile_context>
chip_gen: v7x
topology: tpu7x:2x2x1
jax: 0.10.0
libtpu: 0.0.40
codegen_flags: <defaults>
</compile_context>

<pallas_src>
import functools

import jax
import jax.numpy as jnp
from jax import lax
from jax.experimental import pallas as pl
from jax.experimental.pallas import tpu as pltpu

EPS = 1e-5


def _round_up(x, m):
    return (x + m - 1) // m * m


def _stats_kernel(x_ref, mean_ref, rstd_ref, acc_s_ref, acc_q_ref, *, inv_n, eps):
    """Accumulate sum / sum-of-squares over time tiles; finalize mean & 1/sqrt(var+eps)."""
    t = pl.program_id(1)

    @pl.when(t == 0)
    def _init():
        acc_s_ref[...] = jnp.zeros_like(acc_s_ref)
        acc_q_ref[...] = jnp.zeros_like(acc_q_ref)

    x = x_ref[...].astype(jnp.float32)                 # (C_pad, tile_t), widened per tile
    # Layout-preserving split of the sublane-aligned channel dim -> pure VPU adds into scratch.
    xg = x.reshape(x.shape[0] // 8, 8, x.shape[1])     # (C_pad/8, 8, tile_t)
    acc_s_ref[...] += jnp.sum(xg, axis=0)
    acc_q_ref[...] += jnp.sum(xg * xg, axis=0)

    @pl.when(t == pl.num_programs(1) - 1)
    def _finalize():
        s = jnp.sum(acc_s_ref[...])                    # one small XLU reduce per batch
        q = jnp.sum(acc_q_ref[...])
        mean = s * inv_n
        var = jnp.maximum(q * inv_n - mean * mean, 0.0)
        rstd = lax.rsqrt(var + eps)
        mean_ref[...] = jnp.full(mean_ref.shape, mean, jnp.float32)
        rstd_ref[...] = jnp.full(rstd_ref.shape, rstd, jnp.float32)


def _apply_kernel(x_ref, scale_ref, shift_ref, o_ref):
    """y = x * scale + shift; scale/shift are per-(batch, channel), broadcast over time."""
    x = x_ref[...].astype(jnp.float32)
    o_ref[...] = (x * scale_ref[...] + shift_ref[...]).astype(o_ref.dtype)


def global_layer_norm(x, gamma, beta, *, eps=EPS, max_block_elems=512 * 1024):
    """GlobalLayerNorm forward. x: (B, C, T); gamma, beta: (C, 1)."""
    B, C, T = x.shape
    assert gamma.shape == (C, 1) and beta.shape == (C, 1)

    # Sublane-friendly channel padding (8 for 4-byte dtypes, 16 for 2-byte, 32 for 1-byte).
    c_mult = max(8, 32 // x.dtype.itemsize)
    c_pad = _round_up(C, c_mult)
    # Lane-dense time tile: multiple of 128, sized so the f32 working block stays small.
    tile_t = max(128, (max_block_elems // c_pad) // 128 * 128)
    tile_t = min(tile_t, _round_up(T, 128))
    n_t = pl.cdiv(T, tile_t)
    t_pad = n_t * tile_t

    x_p = x
    if (c_pad, t_pad) != (C, T):
        # Zero padding is exact: zeros add nothing to sum/sumsq; we divide by the true C*T.
        x_p = jnp.pad(x, ((0, 0), (0, c_pad - C), (0, t_pad - T)))

    # Explicit VMEM budget ~= 2x(in) + 2x(out) blocks + f32 temporaries + scratch + headroom.
    blk_bytes = c_pad * tile_t * x.dtype.itemsize
    f32_blk = c_pad * tile_t * 4
    vmem_limit = int(min(48 << 20,
                         max(16 << 20,
                             4 * blk_bytes + 3 * f32_blk + 2 * 8 * tile_t * 4 + (4 << 20))))

    # ---- Pass 1: per-batch mean / inv_std ---------------------------------------------------
    stats_kernel = functools.partial(_stats_kernel, inv_n=1.0 / float(C * T), eps=float(eps))
    mean_o, rstd_o = pl.pallas_call(
        stats_kernel,
        out_shape=(jax.ShapeDtypeStruct((B, 1, 128), jnp.float32),
                   jax.ShapeDtypeStruct((B, 1, 128), jnp.float32)),
        grid_spec=pltpu.PrefetchScalarGridSpec(
            num_scalar_prefetch=0,
            grid=(B, n_t),                                    # reduction axis (time) last
            in_specs=[pl.BlockSpec((None, c_pad, tile_t), lambda b, t: (b, 0, t))],
            out_specs=[pl.BlockSpec((None, 1, 128), lambda b, t: (b, 0, 0)),
                       pl.BlockSpec((None, 1, 128), lambda b, t: (b, 0, 0))],
            scratch_shapes=[pltpu.VMEM((8, tile_t), jnp.float32),
                            pltpu.VMEM((8, tile_t), jnp.float32)]),
        compiler_params=pltpu.CompilerParams(
            dimension_semantics=("parallel", "arbitrary"),
            vmem_limit_bytes=vmem_limit),
    )(x_p)

    # Fold params with the stats once per (batch, channel) — tiny, outside the hot loop.
    mean = mean_o[:, 0, 0]                                    # (B,)
    rstd = rstd_o[:, 0, 0]                                    # (B,)
    scale = gamma.astype(jnp.float32)[None] * rstd[:, None, None]           # (B, C, 1)
    shift = beta.astype(jnp.float32)[None] - mean[:, None, None] * scale    # (B, C, 1)
    if c_pad != C:
        scale = jnp.pad(scale, ((0, 0), (0, c_pad - C), (0, 0)))
        shift = jnp.pad(shift, ((0, 0), (0, c_pad - C), (0, 0)))

    # ---- Pass 2: normalize (fully parallel over batch and time tiles) ------------------------
    out_p = pl.pallas_call(
        _apply_kernel,
        out_shape=jax.ShapeDtypeStruct((B, c_pad, t_pad), x.dtype),
        grid_spec=pltpu.PrefetchScalarGridSpec(
            num_scalar_prefetch=0,
            grid=(B, n_t),
            in_specs=[pl.BlockSpec((None, c_pad, tile_t), lambda b, t: (b, 0, t)),
                      pl.BlockSpec((None, c_pad, 1), lambda b, t: (b, 0, 0)),
                      pl.BlockSpec((None, c_pad, 1), lambda b, t: (b, 0, 0))],
            out_specs=pl.BlockSpec((None, c_pad, tile_t), lambda b, t: (b, 0, t))),
        compiler_params=pltpu.CompilerParams(
            dimension_semantics=("parallel", "parallel"),
            vmem_limit_bytes=vmem_limit),
    )(x_p, scale, shift)

    if (c_pad, t_pad) != (C, T):
        out_p = out_p[:, :C, :T]
    return out_p


def _reference(x, gamma, beta, eps=EPS):
    mean = jnp.mean(x, axis=(1, 2), keepdims=True)
    var = jnp.mean((x - mean) ** 2, axis=(1, 2), keepdims=True)
    xn = (x - mean) / jnp.sqrt(var + eps)
    return gamma[None] * xn + beta[None]


if __name__ == "__main__":
    key = jax.random.PRNGKey(0)
    k1, k2, k3, k4 = jax.random.split(key, 4)

    # Small test at module-like shapes (batch=2, channels(dim)=4, seq=16), params as in __init__.
    B, C, T = 2, 4, 16
    x = jax.random.normal(k1, (B, C, T), dtype=jnp.float32)
    gamma = jnp.ones((C, 1), dtype=jnp.float32)
    beta = jnp.zeros((C, 1), dtype=jnp.float32)
    out = jax.block_until_ready(global_layer_norm(x, gamma, beta))
    ref = _reference(x, gamma, beta)
    assert out.shape == (B, C, T)
    assert jnp.allclose(out, ref, atol=1e-4, rtol=1e-4), "mismatch vs reference (small)"

    # Second check exercising the multi-tile accumulation path (nT > 1) with non-trivial params.
    B2, C2, T2 = 2, 8, 1024
    x2 = jax.random.normal(k2, (B2, C2, T2), dtype=jnp.float32)
    gamma2 = jax.random.normal(k3, (C2, 1), dtype=jnp.float32)
    beta2 = jax.random.normal(k4, (C2, 1), dtype=jnp.float32)
    out2 = jax.block_until_ready(
        global_layer_norm(x2, gamma2, beta2, max_block_elems=8 * 256))  # tile_t=256 -> nT=4
    ref2 = _reference(x2, gamma2, beta2)
    assert jnp.allclose(out2, ref2, atol=1e-4, rtol=1e-4), "mismatch vs reference (tiled)"

    print("KERNEL_OK")
</pallas_src>

<mosaic_0001>
module attributes {stable_mosaic.version = 11 : i64} {
  func.func @_stats_kernel(%arg0: i32, %arg1: i32, %arg2: memref<1x8x128xf32, #tpu.memory_space<vmem>>, %arg3: memref<1x1x128xf32, #tpu.memory_space<vmem>>, %arg4: memref<1x1x128xf32, #tpu.memory_space<vmem>>, %arg5: memref<8x128xf32, #tpu.memory_space<vmem>>, %arg6: memref<8x128xf32, #tpu.memory_space<vmem>>) attributes {dimension_semantics = [#tpu.dimension_semantics<parallel>, #tpu.dimension_semantics<arbitrary>], iteration_bounds = array<i64: 2, 1>, scalar_prefetch = 0 : i64, scratch_operands = 2 : i64, tpu.core_type = #tpu.core_type<tc>, window_params = [{transform_indices = @transform_0, window_bounds = array<i64: 1, 8, 128>}, {transform_indices = @transform_1, window_bounds = array<i64: 1, 1, 128>}, {transform_indices = @transform_2, window_bounds = array<i64: 1, 1, 128>}]} {
    %c0_i32 = arith.constant 0 : i32
    %0 = arith.cmpi eq, %arg1, %c0_i32 : i32
    %1 = arith.extui %0 : i1 to i32
    %c0_i32_0 = arith.constant 0 : i32
    %2 = arith.cmpi ne, %1, %c0_i32_0 : i32
    scf.if %2 {
      %cst_14 = arith.constant 0.000000e+00 : f32
      %18 = vector.broadcast %cst_14 : f32 to vector<8x128xf32>
      %c0_15 = arith.constant 0 : index
      %c0_16 = arith.constant 0 : index
      %19 = vector.load %arg5[%c0_15, %c0_16] : memref<8x128xf32, #tpu.memory_space<vmem>>, vector<8x128xf32>
      tpu.vector_store %arg5[%c0_15, %c0_16], %18 {strides = array<i32>} : memref<8x128xf32, #tpu.memory_space<vmem>>, vector<8x128xf32>,
      %cst_17 = arith.constant 0.000000e+00 : f32
      %20 = vector.broadcast %cst_17 : f32 to vector<8x128xf32>
      %c0_18 = arith.constant 0 : index
      %c0_19 = arith.constant 0 : index
      %21 = vector.load %arg6[%c0_18, %c0_19] : memref<8x128xf32, #tpu.memory_space<vmem>>, vector<8x128xf32>
      tpu.vector_store %arg6[%c0_18, %c0_19], %20 {strides = array<i32>} : memref<8x128xf32, #tpu.memory_space<vmem>>, vector<8x128xf32>,
    } else {
    }
    %c0 = arith.constant 0 : index
    %c0_1 = arith.constant 0 : index
    %c0_2 = arith.constant 0 : index
    %3 = vector.load %arg2[%c0, %c0_1, %c0_2] : memref<1x8x128xf32, #tpu.memory_space<vmem>>, vector<1x8x128xf32>
    %4 = vector.shape_cast %3 : vector<1x8x128xf32> to vector<8x128xf32>
    %5 = vector.shape_cast %4 : vector<8x128xf32> to vector<1x8x128xf32>
    %c0_3 = arith.constant 0 : index
    %c0_4 = arith.constant 0 : index
    %6 = vector.load %arg5[%c0_3, %c0_4] : memref<8x128xf32, #tpu.memory_space<vmem>>, vector<8x128xf32>
    %cst = arith.constant dense<0.000000e+00> : vector<8x128xf32>
    %7 = vector.multi_reduction <add>, %5, %cst [0] : vector<1x8x128xf32> to vector<8x128xf32>
    %8 = arith.addf %6, %7 : vector<8x128xf32>
    %c0_5 = arith.constant 0 : index
    %c0_6 = arith.constant 0 : index
    %9 = vector.load %arg5[%c0_5, %c0_6] : memref<8x128xf32, #tpu.memory_space<vmem>>, vector<8x128xf32>
    tpu.vector_store %arg5[%c0_5, %c0_6], %8 {strides = array<i32>} : memref<8x128xf32, #tpu.memory_space<vmem>>, vector<8x128xf32>,
    %c0_7 = arith.constant 0 : index
    %c0_8 = arith.constant 0 : index
    %10 = vector.load %arg6[%c0_7, %c0_8] : memref<8x128xf32, #tpu.memory_space<vmem>>, vector<8x128xf32>
    %11 = arith.mulf %5, %5 : vector<1x8x128xf32>
    %cst_9 = arith.constant dense<0.000000e+00> : vector<8x128xf32>
    %12 = vector.multi_reduction <add>, %11, %cst_9 [0] : vector<1x8x128xf32> to vector<8x128xf32>
    %13 = arith.addf %10, %12 : vector<8x128xf32>
    %c0_10 = arith.constant 0 : index
    %c0_11 = arith.constant 0 : index
    %14 = vector.load %arg6[%c0_10, %c0_11] : memref<8x128xf32, #tpu.memory_space<vmem>>, vector<8x128xf32>
    tpu.vector_store %arg6[%c0_10, %c0_11], %13 {strides = array<i32>} : memref<8x128xf32, #tpu.memory_space<vmem>>, vector<8x128xf32>,
    %c0_i32_12 = arith.constant 0 : i32
    %15 = arith.cmpi eq, %arg1, %c0_i32_12 : i32
    %16 = arith.extui %15 : i1 to i32
    %c0_i32_13 = arith.constant 0 : i32
    %17 = arith.cmpi ne, %16, %c0_i32_13 : i32
    scf.if %17 {
      %c0_14 = arith.constant 0 : index
      %c0_15 = arith.constant 0 : index
      %18 = vector.load %arg5[%c0_14, %c0_15] : memref<8x128xf32, #tpu.memory_space<vmem>>, vector<8x128xf32>
      %19 = vector.shape_cast %18 : vector<8x128xf32> to vector<1x8x128xf32>
      %cst_16 = arith.constant dense<0.000000e+00> : vector<1xf32>
      %20 = vector.multi_reduction <add>, %19, %cst_16 [1, 2] : vector<1x8x128xf32> to vector<1xf32>
      %21 = vector.shape_cast %20 : vector<1xf32> to vector<1x1x1xf32>
      %22 = vector.extract %21[0, 0, 0] : f32 from vector<1x1x1xf32>
      %c0_17 = arith.constant 0 : index
      %c0_18 = arith.constant 0 : index
      %23 = vector.load %arg6[%c0_17, %c0_18] : memref<8x128xf32, #tpu.memory_space<vmem>>, vector<8x128xf32>
      %24 = vector.shape_cast %23 : vector<8x128xf32> to vector<1x8x128xf32>
      %cst_19 = arith.constant dense<0.000000e+00> : vector<1xf32>
      %25 = vector.multi_reduction <add>, %24, %cst_19 [1, 2] : vector<1x8x128xf32> to vector<1xf32>
      %26 = vector.shape_cast %25 : vector<1xf32> to vector<1x1x1xf32>
      %27 = vector.extract %26[0, 0, 0] : f32 from vector<1x1x1xf32>
      %cst_20 = arith.constant 1.562500e-02 : f32
      %28 = arith.mulf %22, %cst_20 : f32
      %cst_21 = arith.constant 1.562500e-02 : f32
      %29 = arith.mulf %27, %cst_21 : f32
      %30 = arith.mulf %28, %28 : f32
      %31 = arith.subf %29, %30 : f32
      %cst_22 = arith.constant 0.000000e+00 : f32
      %32 = arith.maximumf %31, %cst_22 : f32
      %cst_23 = arith.constant 9.99999974E-6 : f32
      %33 = arith.addf %32, %cst_23 : f32
      %34 = math.rsqrt %33 : f32
      %35 = vector.broadcast %28 : f32 to vector<1x128xf32>
      %c0_24 = arith.constant 0 : index
      %c0_25 = arith.constant 0 : index
      %c0_26 = arith.constant 0 : index
      %36 = vector.load %arg3[%c0_24, %c0_25, %c0_26] : memref<1x1x128xf32, #tpu.memory_space<vmem>>, vector<1x1x128xf32>
      %37 = vector.shape_cast %36 : vector<1x1x128xf32> to vector<1x128xf32>
      %38 = vector.shape_cast %35 : vector<1x128xf32> to vector<1x1x128xf32>
      tpu.vector_store %arg3[%c0_24, %c0_25, %c0_26], %38 {strides = array<i32>} : memref<1x1x128xf32, #tpu.memory_space<vmem>>, vector<1x1x128xf32>,
      %39 = vector.broadcast %34 : f32 to vector<1x128xf32>
      %c0_27 = arith.constant 0 : index
      %c0_28 = arith.constant 0 : index
      %c0_29 = arith.constant 0 : index
      %40 = vector.load %arg4[%c0_27, %c0_28, %c0_29] : memref<1x1x128xf32, #tpu.memory_space<vmem>>, vector<1x1x128xf32>
      %41 = vector.shape_cast %40 : vector<1x1x128xf32> to vector<1x128xf32>
      %42 = vector.shape_cast %39 : vector<1x128xf32> to vector<1x1x128xf32>
      tpu.vector_store %arg4[%c0_27, %c0_28, %c0_29], %42 {strides = array<i32>} : memref<1x1x128xf32, #tpu.memory_space<vmem>>, vector<1x1x128xf32>,
    } else {
    }
    return
  }
  func.func @transform_0(%arg0: i32, %arg1: i32) -> (i32, i32, i32) {
    %c0_i32 = arith.constant 0 : i32
    %c0_i32_0 = arith.constant 0 : i32
    return %arg0, %c0_i32, %arg1 : i32, i32, i32
  }
  func.func @transform_1(%arg0: i32, %arg1: i32) -> (i32, i32, i32) {
    %c0_i32 = arith.constant 0 : i32
    %c0_i32_0 = arith.constant 0 : i32
    %c0_i32_1 = arith.constant 0 : i32
    return %arg0, %c0_i32, %c0_i32_0 : i32, i32, i32
  }
  func.func @transform_2(%arg0: i32, %arg1: i32) -> (i32, i32, i32) {
    %c0_i32 = arith.constant 0 : i32
    %c0_i32_0 = arith.constant 0 : i32
    %c0_i32_1 = arith.constant 0 : i32
    return %arg0, %c0_i32, %c0_i32_0 : i32, i32, i32
  }
}

</mosaic_0001>

<llo_original>
// kernel: tpu_custom_call.1
$region0: #{tpu_custom_call.1}
  #allocation0 [shape = 'u32[]', space=smem, size = 0x4, offset = 0x4, fixed_abs, tag = 'smem constant byte address 0x4 - core index']
  #allocation1 [shape = 'u32[144,128]{1,0:T(1,128)}', space=vmem, size = 0x12000, scoped, tag = 'internal scratch']
  #allocation2 [shape = 'f32[8,128]{1,0:T(8,128)}', space=vmem, size = 0x1000, scoped, tag = 'scratch operand']
  #allocation3 [shape = 'f32[8,128]{1,0:T(8,128)}', space=vmem, size = 0x1000, scoped, tag = 'scratch operand']
  %s0 = inlined_call_operand.hbm [shape: f32[2,8,128], index: 0, kind: input, shape index: {}]
  %s1 = inlined_call_operand.hbm [shape: f32[2,1,128], index: 1, kind: output, shape index: {0}]
  %s2 = inlined_call_operand.hbm [shape: f32[2,1,128], index: 2, kind: output, shape index: {1}]
  %3 = xla_tuple %s1, %s2
  %s4 = sld [smem:[#allocation0]]
  $region57: #{tpu_custom_call.1} parent=0
    _
  %s6 = ssub.s32 1, %s4
  %s7 = scalar_select 0, %s6, %s4
  $region1: #{tpu_custom_call.1} parent=0
    #allocation4 [shape = 'u8[8192]{0}', space=vmem, size = 0x2000, scoped, tag = 'input window, operand 0']
    #allocation5 [shape = 's32[2]{0}', space=sflag, size = 0x8, scoped, tag = 'scoped memory for tpu_custom_call.1']
    #allocation6 [shape = 's32[2]{0}', space=sflag, size = 0x8, scoped, tag = 'scoped memory for tpu_custom_call.1']
    #allocation7 [shape = 'u8[1024]{0}', space=vmem, size = 0x400, scoped, tag = 'output window, operand 0']
    #allocation8 [shape = 'u8[1024]{0}', space=vmem, size = 0x400, scoped, tag = 'output window, operand 1']
    #allocation9 [shape = 's32[2]{0}', space=sflag, size = 0x8, scoped, tag = 'scoped memory for tpu_custom_call.1']
    %8 = vsyncpa [#allocation5], 0
    %s9 = scalar_lea.sflag [#allocation5], 1
    %10 = vsyncpa %s9, 0
    %11 = vsyncpa [#allocation6], 0
    %s12 = scalar_lea.sflag [#allocation6], 1
    %13 = vsyncpa %s12, 0
    %14 = vsyncpa [#allocation9], 0
    %s15 = scalar_lea.sflag [#allocation9], 1
    %16 = vsyncpa %s15, 0
    loop: start=0, step=1, limit=4
    $region2: #{tpu_custom_call.1} parent=1 // loop_pre_header
      _
    $region3: #{tpu_custom_call.1} parent=1 // loop_header
      %s18 = sphi 0, %s22
      %p19 = scmp.ge.s32.totalorder %s18, 4
      %s25 = sphi 0, %s37
      %s26 = sphi 0, %s33
      %s27 = sphi 0, %s25
      %s28 = sphi 0, %s26
      %s29 = sphi 0, %s27
      %s30 = sphi 0, %s28
      %s42 = sphi 0, %s44
      %s45 = sphi 0, %s42
      %s46 = sphi 0, %s45
      %s62 = sphi 0, %s46
      %s68 = sphi 0, %s70
      %s71 = sphi 0, %s68
      %s72 = sphi 0, %s71
      %s88 = sphi 0, %s72
      %s94 = sphi 0, %s96
      %s97 = sphi 0, %s94
      %s98 = sphi 0, %s97
      %s114 = sphi 0, %s98
    $region4: #{tpu_custom_call.1} parent=1 // loop_header_branch
      %21 = sbr.rel (%p19) target = $region8
    $region5: #{tpu_custom_call.1} parent=1 // loop_body
      %s23 = ssub.s32 %s18, 1
      %s24 = ssub.s32 %s18, 2
      %s31 = sadd.s32 1, %s26
      %p32 = scmp.ge.s32.totalorder %s31, 1
      %s33 = scalar_select %p32, 0, %s31
      %s34 = sadd.s32 1, %s25
      %s35 = scalar_select %p32, %s34, %s25
      %p36 = scmp.ge.s32.totalorder %s35, 2
      %s37 = scalar_select %p36, 0, %s35
      %s38 = ssub.s32 %s25, %s37
      %s39 = ssub.s32 %s26, %s33
      %s40 = sor.u32 %s38, %s39
      %p41 = scmp.eq.s32.totalorder %s40, 0
      %s43 = sadd.s32 %s42, 1
      %s44 = scalar_select %p41, %s42, %s43
      %p47 = pneg %p41
      %p48 = scmp.eq.s32.totalorder %s18, 1
      %p49 = por %p47, %p48
      %p50 = scmp.ne.s32.totalorder %s42, %s45
      %p51 = scmp.eq.s32.totalorder %s18, 0
      %p52 = por %p50, %p51
      %p53 = scmp.ne.s32.totalorder %s42, %s45
      %p54 = scmp.eq.s32.totalorder %s23, 1
      %p55 = por %p53, %p54
      %p56 = scmp.ne.s32.totalorder %s45, %s46
      %p57 = scmp.eq.s32.totalorder %s23, 0
      %p58 = por %p56, %p57
      %p59 = scmp.ne.s32.totalorder %s45, %s46
      %p60 = scmp.eq.s32.totalorder %s24, 1
      %p61 = por %p59, %p60
      %p63 = scmp.ne.s32.totalorder %s46, %s62
      %p64 = scmp.eq.s32.totalorder %s24, 0
      %p65 = por %p63, %p64
      %s66 = ssub.s32 %s25, %s37
      %p67 = scmp.eq.s32.totalorder %s66, 0
      %s69 = sadd.s32 %s68, 1
      %s70 = scalar_select %p67, %s68, %s69
      %p73 = pneg %p67
      %p74 = scmp.eq.s32.totalorder %s18, 1
      %p75 = por %p73, %p74
      %p76 = scmp.ne.s32.totalorder %s68, %s71
      %p77 = scmp.eq.s32.totalorder %s18, 0
      %p78 = por %p76, %p77
      %p79 = scmp.ne.s32.totalorder %s68, %s71
      %p80 = scmp.eq.s32.totalorder %s23, 1
      %p81 = por %p79, %p80
      %p82 = scmp.ne.s32.totalorder %s71, %s72
      %p83 = scmp.eq.s32.totalorder %s23, 0
      %p84 = por %p82, %p83
      %p85 = scmp.ne.s32.totalorder %s71, %s72
      %p86 = scmp.eq.s32.totalorder %s24, 1
      %p87 = por %p85, %p86
      %p89 = scmp.ne.s32.totalorder %s72, %s88
      %p90 = scmp.eq.s32.totalorder %s24, 0
      %p91 = por %p89, %p90
      %s92 = ssub.s32 %s25, %s37
      %p93 = scmp.eq.s32.totalorder %s92, 0
      %s95 = sadd.s32 %s94, 1
      %s96 = scalar_select %p93, %s94, %s95
      %p99 = pneg %p93
      %p100 = scmp.eq.s32.totalorder %s18, 1
      %p101 = por %p99, %p100
      %p102 = scmp.ne.s32.totalorder %s94, %s97
      %p103 = scmp.eq.s32.totalorder %s18, 0
      %p104 = por %p102, %p103
      %p105 = scmp.ne.s32.totalorder %s94, %s97
      %p106 = scmp.eq.s32.totalorder %s23, 1
      %p107 = por %p105, %p106
      %p108 = scmp.ne.s32.totalorder %s97, %s98
      %p109 = scmp.eq.s32.totalorder %s23, 0
      %p110 = por %p108, %p109
      %p111 = scmp.ne.s32.totalorder %s97, %s98
      %p112 = scmp.eq.s32.totalorder %s24, 1
      %p113 = por %p111, %p112
      %p115 = scmp.ne.s32.totalorder %s98, %s114
      %p116 = scmp.eq.s32.totalorder %s24, 0
      %p117 = por %p115, %p116
      %p118 = scmp.le.s32.totalorder 1, %s18
      %p119 = scmp.lt.s32.totalorder %s18, 3
      %p120 = pnand %p118, %p119
      %p121 = pneg %p120
      // Predicated region
      $region9: #{tpu_custom_call.1} parent=5 // pred_check
        _
      $region10: #{tpu_custom_call.1} parent=5 // pred_check_branch
        %123 = sbr.rel (%p120) target = $region12
      $region11: #{tpu_custom_call.1} parent=5 // pred_region
        %s124 = ssub.s32 %s18, 1
      $region12: #{tpu_custom_call.1} parent=5 // pred_fallthru
        _
      %p125 = scmp.lt.s32.totalorder %s18, 2
      // Predicated region
      $region13: #{tpu_custom_call.1} parent=5 // pred_check
        %p126 = pneg %p125
      $region14: #{tpu_custom_call.1} parent=5 // pred_check_branch
        %128 = sbr.rel (%p126) target = $region16
      $region15: #{tpu_custom_call.1} parent=5 // pred_region
        // Predicated region
        $region17: #{tpu_custom_call.1} parent=15 // pred_check
          %p129 = pneg %p52
        $region18: #{tpu_custom_call.1} parent=15 // pred_check_branch
          %131 = sbr.rel (%p129) target = $region20
        $region19: #{tpu_custom_call.1} parent=15 // pred_region
          %s132 = sand.u32 %s42, 1
          %s133 = scalar_lea.sflag [#allocation5], %s132
          %s134 = sand.u32 %s42, 1
          %s135 = smul.addr %s134, 8
          %s136 = scalar_lea.vmem [#allocation4], %s135
          %s138 = ssub.s32 128, 128
          %139 = vsyncadd %s133, %s138
          %s140 = sadd.s32 %s26, %s25
          %s141 = smul.addr %s140, 128
          %s142 = scalar_lea.hbm %s0, %s141
          %s144 = sshll.u32 %s136, 4
          %s145 = int_to_ptr.vmem [resolvable:$true] %s144
          %147 = dma.hbm_to_vmem [thread:$0]  %s142, 128, %s145, %s133
        $region20: #{tpu_custom_call.1} parent=15 // pred_fallthru
          _
      $region16: #{tpu_custom_call.1} parent=5 // pred_fallthru
        _
      %p148 = scmp.le.s32.totalorder 1, %s18
      %p149 = scmp.lt.s32.totalorder %s18, 3
      %p150 = pnand %p148, %p149
      %p151 = pneg %p150
      // Predicated region
      $region21: #{tpu_custom_call.1} parent=5 // pred_check
        _
      $region22: #{tpu_custom_call.1} parent=5 // pred_check_branch
        %153 = sbr.rel (%p150) target = $region24
      $region23: #{tpu_custom_call.1} parent=5 // pred_region
        %s154 = ssub.s32 %s18, 1
        %s155 = sand.u32 %s45, 1
        %s156 = scalar_lea.sflag [#allocation5], %s155
        %s157 = sand.u32 %s45, 1
        %s158 = smul.addr %s157, 8
        %s159 = scalar_lea.vmem [#allocation4], %s158
        // Predicated region
        $region25: #{tpu_custom_call.1} parent=23 // pred_check
          %p160 = pneg %p58
        $region26: #{tpu_custom_call.1} parent=23 // pred_check_branch
          %162 = sbr.rel (%p160) target = $region28
        $region27: #{tpu_custom_call.1} parent=23 // pred_region
          %163 = dma.done %s156, 128
        $region28: #{tpu_custom_call.1} parent=23 // pred_fallthru
          _
        %s164 = sand.u32 %s45, 1
        %s165 = scalar_lea.sflag [#allocation5], %s164
        %s166 = sand.u32 %s45, 1
        %s167 = smul.addr %s166, 8
        %s168 = scalar_lea.vmem [#allocation4], %s167
        %p169 = pneg %p58
        %p170 = pneg %p55
        %p171 = pneg %p84
        %p172 = pneg %p81
        %s173 = sand.u32 %s71, 1
        %s174 = scalar_lea.sflag [#allocation6], %s173
        %s175 = sand.u32 %s71, 1
        %s176 = scalar_lea.vmem [#allocation7], %s175
        %p177 = pneg %p110
        %p178 = pneg %p107
        %s179 = sand.u32 %s97, 1
        %s180 = scalar_lea.sflag [#allocation9], %s179
        %s181 = sand.u32 %s97, 1
        %s182 = scalar_lea.vmem [#allocation8], %s181
        %p183 = scmp.eq.s32.totalorder %s28, 0
        // Predicated region
        $region29: #{tpu_custom_call.1} parent=23 // pred_check
          %p184 = pneg %p183
        $region30: #{tpu_custom_call.1} parent=23 // pred_check_branch
          %186 = sbr.rel (%p184) target = $region32
        $region31: #{tpu_custom_call.1} parent=23 // pred_region
          %187 = vst [vmem:[#allocation2] sm:$0xff] 0.0
          %188 = vst [vmem:[#allocation3] sm:$0xff] 0.0
        $region32: #{tpu_custom_call.1} parent=23 // pred_fallthru
          _
        %v189 = vld [vmem:[%s159] sm:$0xff]
        %v190 = vld [vmem:[#allocation2] sm:$0xff]
        %v191 = vadd.f32 %v189, 0.0
        %v192 = vadd.f32 %v190, %v191
        %193 = vst [vmem:[#allocation2] sm:$0xff] %v192
        %v194 = vld [vmem:[#allocation3] sm:$0xff]
        %v195 = vmul.f32 %v189, %v189
        %v196 = vadd.f32 %v195, 0.0
        %v197 = vadd.f32 %v194, %v196
        %198 = vst [vmem:[#allocation3] sm:$0xff] %v197
        // Predicated region
        $region33: #{tpu_custom_call.1} parent=23 // pred_check
          %p199 = pneg %p183
        $region34: #{tpu_custom_call.1} parent=23 // pred_check_branch
          %201 = sbr.rel (%p199) target = $region36
        $region35: #{tpu_custom_call.1} parent=23 // pred_region
          %v202 = vld [vmem:[#allocation2] sm:$0xff]
          %203 = vadd.xlane.f32.xlu0 %v202
          %v204 = vpop.xlane.xlu0 %203
          %v205 = vrot.slane %v204, 4
          %v206 = vadd.f32 %v204, %v205
          %v207 = vrot.slane %v206, 2
          %v208 = vadd.f32 %v206, %v207
          %v209 = vrot.slane %v208, 1
          %v210 = vadd.f32 %v208, %v209
          %s211 = vtos %v210
          %v212 = vld [vmem:[#allocation3] sm:$0xff]
          %213 = vadd.xlane.f32.xlu0 %v212
          %v214 = vpop.xlane.xlu0 %213
          %v215 = vrot.slane %v214, 4
          %v216 = vadd.f32 %v214, %v215
          %v217 = vrot.slane %v216, 2
          %v218 = vadd.f32 %v216, %v217
          %v219 = vrot.slane %v218, 1
          %v220 = vadd.f32 %v218, %v219
          %s221 = vtos %v220
          %s222 = smul.f32 %s211, 0.015625
          %s223 = smul.f32 %s221, 0.015625
          %s224 = smul.f32 %s222, %s222
          %s225 = ssub.f32 %s223, %s224
          %s226 = smax.f32 %s225, 0.0
          %s227 = sadd.f32 %s226, 1e-05
          %v228 = vstv %s227
          %v229 = vrsqrt.pop %v228
          %s230 = vtos %v229
          %v231 = vstv %s222
          %232 = vst [vmem:[%s176] sm:$0x1] %v231
          %v233 = vstv %s230
          %234 = vst [vmem:[%s182] sm:$0x1] %v233
        $region36: #{tpu_custom_call.1} parent=23 // pred_fallthru
          _
        %s235 = sand.u32 %s71, 1
        %s236 = scalar_lea.sflag [#allocation6], %s235
        %s237 = sand.u32 %s71, 1
        %s238 = scalar_lea.vmem [#allocation7], %s237
        %s239 = sand.u32 %s97, 1
        %s240 = scalar_lea.sflag [#allocation9], %s239
        %s241 = sand.u32 %s97, 1
        %s242 = scalar_lea.vmem [#allocation8], %s241
        // Predicated region
        $region37: #{tpu_custom_call.1} parent=23 // pred_check
          %p243 = pneg %p81
        $region38: #{tpu_custom_call.1} parent=23 // pred_check_branch
          %245 = sbr.rel (%p243) target = $region40
        $region39: #{tpu_custom_call.1} parent=23 // pred_region
          %s247 = ssub.s32 16, 16
          %248 = vsyncadd %s236, %s247
          %s249 = smul.addr %s27, 16
          %s250 = scalar_lea.hbm %s1, %s249
          %s252 = sshll.u32 %s238, 4
          %s253 = int_to_ptr.vmem [resolvable:$true] %s252
          %255 = dma.vmem_to_hbm [thread:$0]  %s253, 16, %s250, %s236
        $region40: #{tpu_custom_call.1} parent=23 // pred_fallthru
          _
        // Predicated region
        $region41: #{tpu_custom_call.1} parent=23 // pred_check
          %p256 = pneg %p107
        $region42: #{tpu_custom_call.1} parent=23 // pred_check_branch
          %258 = sbr.rel (%p256) target = $region44
        $region43: #{tpu_custom_call.1} parent=23 // pred_region
          %s260 = ssub.s32 16, 16
          %261 = vsyncadd %s240, %s260
          %s262 = smul.addr %s27, 16
          %s263 = scalar_lea.hbm %s2, %s262
          %s265 = sshll.u32 %s242, 4
          %s266 = int_to_ptr.vmem [resolvable:$true] %s265
          %268 = dma.vmem_to_hbm [thread:$0]  %s266, 16, %s263, %s240
        $region44: #{tpu_custom_call.1} parent=23 // pred_fallthru
          _
      $region24: #{tpu_custom_call.1} parent=5 // pred_fallthru
        _
      %p269 = scmp.le.s32.totalorder 2, %s18
      // Predicated region
      $region45: #{tpu_custom_call.1} parent=5 // pred_check
        %p270 = pneg %p269
      $region46: #{tpu_custom_call.1} parent=5 // pred_check_branch
        %272 = sbr.rel (%p270) target = $region48
      $region47: #{tpu_custom_call.1} parent=5 // pred_region
        %s273 = ssub.s32 %s18, 2
        // Predicated region
        $region49: #{tpu_custom_call.1} parent=47 // pred_check
          %p274 = pneg %p87
        $region50: #{tpu_custom_call.1} parent=47 // pred_check_branch
          %276 = sbr.rel (%p274) target = $region52
        $region51: #{tpu_custom_call.1} parent=47 // pred_region
          %s277 = sand.u32 %s72, 1
          %s278 = scalar_lea.sflag [#allocation6], %s277
          %s279 = sand.u32 %s72, 1
          %s280 = scalar_lea.vmem [#allocation7], %s279
          %281 = dma.done %s278, 16
        $region52: #{tpu_custom_call.1} parent=47 // pred_fallthru
          _
        // Predicated region
        $region53: #{tpu_custom_call.1} parent=47 // pred_check
          %p282 = pneg %p113
        $region54: #{tpu_custom_call.1} parent=47 // pred_check_branch
          %284 = sbr.rel (%p282) target = $region56
        $region55: #{tpu_custom_call.1} parent=47 // pred_region
          %s285 = sand.u32 %s98, 1
          %s286 = scalar_lea.sflag [#allocation9], %s285
          %s287 = sand.u32 %s98, 1
          %s288 = scalar_lea.vmem [#allocation8], %s287
          %289 = dma.done %s286, 16
        $region56: #{tpu_custom_call.1} parent=47 // pred_fallthru
          _
      $region48: #{tpu_custom_call.1} parent=5 // pred_fallthru
        _
    $region6: #{tpu_custom_call.1} parent=1 // loop_footer
      %s22 = sadd.s32 1, %s18
    $region7: #{tpu_custom_call.1} parent=1 // loop_footer_branch
      %17 = sbr.rel target = $region3
    $region8: #{tpu_custom_call.1} parent=1 // loop_exit
      _
    %290 = vsyncpa [#allocation5], 1
    %s291 = scalar_lea.sflag [#allocation5], 1
    %292 = vsyncpa %s291, 1
    %293 = vsyncpa [#allocation6], 1
    %s294 = scalar_lea.sflag [#allocation6], 1
    %295 = vsyncpa %s294, 1
    %296 = vsyncpa [#allocation9], 1
    %s297 = scalar_lea.sflag [#allocation9], 1
    %298 = vsyncpa %s297, 1

</llo_original>
